<compile_context>
chip_gen: v7x
topology: tpu7x:2x2x1
jax: 0.10.0
libtpu: 0.0.40
codegen_flags: <defaults>
</compile_context>

<pallas_src>
import jax
import jax.numpy as jnp
from jax.experimental import pallas as pl
from jax.experimental.pallas import tpu as pltpu


def _round_up(n, m):
    return ((n + m - 1) // m) * m


# --------------------------------------------------------------------------
# Kernel
# --------------------------------------------------------------------------
def _convnet_kernel(x_ref,
                    w1_ref, b1_ref,
                    w2_ref, b2_ref,
                    w3_ref, b3_ref,
                    wfc_ref, bfc_ref,
                    out_ref):
    Bt, L, Ep = x_ref.shape
    M = Bt * L

    def conv_relu(h, w_ref, b_ref):
        # h: [M, K] f32.  Width-2 "conv" along the sequence axis as ONE matmul:
        # cat = [h_t | h_{t+1}] along lanes, then [M, 2K] @ [2K, Cp].
        # The sequence shift is an XLU sublane roll; the last row of each
        # batch wraps around (garbage) and is masked before the max-pool.
        nxt = pltpu.roll(h, shift=M - 1, axis=0)              # nxt[m] = h[m + 1]
        cat = jnp.concatenate([h.astype(jnp.bfloat16),        # bf16 before concat
                               nxt.astype(jnp.bfloat16)], axis=-1)
        y = jnp.dot(cat, w_ref[...],                          # bf16 MXU, f32 acc
                    preferred_element_type=jnp.float32)
        return jnp.maximum(y + b_ref[...], 0.0)               # f32 bias + relu

    x = x_ref[...].astype(jnp.float32).reshape(M, Ep)         # [(Bt*L), Ep]

    h1 = conv_relu(x, w1_ref, b1_ref)                         # valid rows t <= L-2
    h2 = conv_relu(h1, w2_ref, b2_ref)                        # valid rows t <= L-3
    h3 = conv_relu(h2, w3_ref, b3_ref)                        # valid rows t <= L-4

    # Extra F.relu in the reference is a no-op (h3 >= 0 already).
    # Mask rows whose window ran off the end of the sequence, then global
    # max-pool over the L-3 valid positions (h3 >= 0, so a zero mask is exact).
    h3 = h3.reshape(Bt, L, -1)
    t = jax.lax.broadcasted_iota(jnp.int32, h3.shape, 1)
    h3 = jnp.where(t < L - 3, h3, 0.0)
    pooled = jnp.max(h3, axis=1)                              # [Bt, Cp]

    # TODO(synk): dropout omitted (dropout_prob=0.0 default => identity).
    # fc (N=1) on the VPU/XLU: elementwise multiply + cross-lane sum.
    logits = jnp.sum(pooled * wfc_ref[...], axis=-1, keepdims=True) + bfc_ref[...]
    out_ref[...] = jax.nn.sigmoid(logits).astype(out_ref.dtype)


# --------------------------------------------------------------------------
# Wrapper
# --------------------------------------------------------------------------
def complex_convnet_forward(tokens, emb_table, kparams, *, block_b=8):
    """tokens: int32 [B, L]; emb_table: [V, E] frozen embeddings."""
    assert block_b % 8 == 0
    x = emb_table[tokens].astype(jnp.float32)                 # embedding gather (glue)
    B, L, E = x.shape
    assert L >= 4, "three width-2 convs need L >= 4"

    Ep = kparams['w1'].shape[0] // 2
    Cp = kparams['w1'].shape[1]

    # lane-pad the feature dim; pad batch up to a multiple of the batch block.
    Bt = min(block_b, _round_up(B, 8))
    Bp = _round_up(B, Bt)
    x = jnp.pad(x, ((0, Bp - B), (0, 0), (0, Ep - E)))

    const2 = lambda i: (0, 0)                                 # weights stay resident

    out = pl.pallas_call(
        _convnet_kernel,
        out_shape=jax.ShapeDtypeStruct((Bp, 1), jnp.float32),
        grid=(Bp // Bt,),
        in_specs=[
            pl.BlockSpec((Bt, L, Ep), lambda i: (i, 0, 0)),   # x: blocked on batch
            pl.BlockSpec((2 * Ep, Cp), const2),               # fused conv1 weight
            pl.BlockSpec((1, Cp), const2),
            pl.BlockSpec((2 * Cp, Cp), const2),               # fused conv2 weight
            pl.BlockSpec((1, Cp), const2),
            pl.BlockSpec((2 * Cp, Cp), const2),               # fused conv3 weight
            pl.BlockSpec((1, Cp), const2),
            pl.BlockSpec((1, Cp), const2),                    # fc weight (row)
            pl.BlockSpec((1, 1), const2),                     # fc bias
        ],
        out_specs=pl.BlockSpec((Bt, 1), lambda i: (i, 0)),
        compiler_params=pltpu.CompilerParams(
            dimension_semantics=("parallel",),                # megacore on v7x
            vmem_limit_bytes=32 * 1024 * 1024,
        ),
    )(x, kparams['w1'], kparams['b1'], kparams['w2'], kparams['b2'],
      kparams['w3'], kparams['b3'], kparams['wfc'], kparams['bfc'])
    return out[:B, 0]                                         # squeeze(1)


# --------------------------------------------------------------------------
# Parameters
# --------------------------------------------------------------------------
def init_params(key, embedding_dim, n_channels):
    """Raw (PyTorch-equivalent) parameters, f32, unpadded.

    convN.weight [C,1,2,D_in] is stored as two [D_in,C] matrices wNa/wNb
    (kernel rows, pre-transposed for right-multiplication).
    """
    E, C = embedding_dim, n_channels
    ks = jax.random.split(key, 7)

    def w(k, d_in):
        return jax.random.normal(k, (d_in, C), jnp.float32) / jnp.sqrt(2.0 * d_in)

    return dict(
        w1a=w(ks[0], E), w1b=w(ks[1], E), b1=jnp.full((1, C), 0.01, jnp.float32),
        w2a=w(ks[2], C), w2b=w(ks[3], C), b2=jnp.full((1, C), 0.01, jnp.float32),
        w3a=w(ks[4], C), w3b=w(ks[5], C), b3=jnp.full((1, C), 0.01, jnp.float32),
        wfc=jax.random.normal(ks[6], (C, 1), jnp.float32) / jnp.sqrt(float(C)),
        bfc=jnp.zeros((1, 1), jnp.float32),
    )


def prepare_params(raw, lane=128):
    """Fuse (wa;wb) along K, zero-pad feature/channel dims to 128 lanes, bf16."""
    E, C = raw['w1a'].shape
    Ep, Cp = _round_up(E, lane), _round_up(C, lane)

    def fuse(wa, wb, k, kp):
        wa = jnp.pad(wa, ((0, kp - k), (0, Cp - C)))
        wb = jnp.pad(wb, ((0, kp - k), (0, Cp - C)))
        return jnp.concatenate([wa, wb], axis=0).astype(jnp.bfloat16)   # [2*kp, Cp]

    def pad_b(b):
        return jnp.pad(b, ((0, 0), (0, Cp - C))).astype(jnp.float32)    # [1, Cp]

    return dict(
        w1=fuse(raw['w1a'], raw['w1b'], E, Ep), b1=pad_b(raw['b1']),
        w2=fuse(raw['w2a'], raw['w2b'], C, Cp), b2=pad_b(raw['b2']),
        w3=fuse(raw['w3a'], raw['w3b'], C, Cp), b3=pad_b(raw['b3']),
        wfc=jnp.pad(raw['wfc'].T, ((0, 0), (0, Cp - C))).astype(jnp.float32),
        bfc=raw['bfc'].astype(jnp.float32),
    )


# --------------------------------------------------------------------------
# Pure-JAX reference (matches the PyTorch forward)
# --------------------------------------------------------------------------
def reference_forward(tokens, emb_table, raw):
    x = emb_table[tokens].astype(jnp.float32)                 # [B, L, E]

    def conv_relu(h, wa, wb, b):
        y = (jnp.einsum('bld,dc->blc', h[:, :-1, :], wa)
             + jnp.einsum('bld,dc->blc', h[:, 1:, :], wb) + b[None])
        return jnp.maximum(y, 0.0)

    h = conv_relu(x, raw['w1a'], raw['w1b'], raw['b1'])
    h = conv_relu(h, raw['w2a'], raw['w2b'], raw['b2'])
    h = conv_relu(h, raw['w3a'], raw['w3b'], raw['b3'])
    pooled = jnp.max(h, axis=1)
    logits = pooled @ raw['wfc'] + raw['bfc']
    return jax.nn.sigmoid(logits)[:, 0]


if __name__ == "__main__":
    key = jax.random.PRNGKey(0)
    k_emb, k_tok, k_par = jax.random.split(key, 3)

    VOCAB, E, C = 20, 32, 32        # embedding_dim=32, n_channels=32
    B, L = 16, 8                    # batch=16 -> grid of 2 blocks of 8

    emb_table = jax.random.normal(k_emb, (VOCAB, E), jnp.float32)
    tokens = jax.random.randint(k_tok, (B, L), 0, VOCAB, dtype=jnp.int32)
    raw = init_params(k_par, E, C)
    kparams = prepare_params(raw)

    probs = complex_convnet_forward(tokens, emb_table, kparams, block_b=8)
    jax.block_until_ready(probs)

    assert probs.shape == (B,)
    assert bool(jnp.all(jnp.isfinite(probs)))
    assert bool(jnp.all((probs >= 0.0) & (probs <= 1.0)))

    ref = reference_forward(tokens, emb_table, raw)
    assert bool(jnp.max(jnp.abs(probs - ref)) < 5e-2), (probs, ref)

    print("KERNEL_OK")
</pallas_src>

<mosaic_0001>
module attributes {stable_mosaic.version = 11 : i64} {
  func.func @_convnet_kernel(%arg0: i32, %arg1: memref<8x8x128xf32, #tpu.memory_space<vmem>>, %arg2: memref<256x128xbf16, #tpu.memory_space<vmem>>, %arg3: memref<1x128xf32, #tpu.memory_space<vmem>>, %arg4: memref<256x128xbf16, #tpu.memory_space<vmem>>, %arg5: memref<1x128xf32, #tpu.memory_space<vmem>>, %arg6: memref<256x128xbf16, #tpu.memory_space<vmem>>, %arg7: memref<1x128xf32, #tpu.memory_space<vmem>>, %arg8: memref<1x128xf32, #tpu.memory_space<vmem>>, %arg9: memref<1x1xf32, #tpu.memory_space<vmem>>, %arg10: memref<8x1xf32, #tpu.memory_space<vmem>>) attributes {dimension_semantics = [#tpu.dimension_semantics<parallel>], iteration_bounds = array<i64: 2>, scalar_prefetch = 0 : i64, scratch_operands = 0 : i64, tpu.core_type = #tpu.core_type<tc>, window_params = [{transform_indices = @transform_0, window_bounds = array<i64: 8, 8, 128>}, {pipeline_mode = #tpu.pipeline_mode<synchronous>, transform_indices = @transform_1, window_bounds = array<i64: 256, 128>}, {pipeline_mode = #tpu.pipeline_mode<synchronous>, transform_indices = @transform_2, window_bounds = array<i64: 1, 128>}, {pipeline_mode = #tpu.pipeline_mode<synchronous>, transform_indices = @transform_3, window_bounds = array<i64: 256, 128>}, {pipeline_mode = #tpu.pipeline_mode<synchronous>, transform_indices = @transform_4, window_bounds = array<i64: 1, 128>}, {pipeline_mode = #tpu.pipeline_mode<synchronous>, transform_indices = @transform_5, window_bounds = array<i64: 256, 128>}, {pipeline_mode = #tpu.pipeline_mode<synchronous>, transform_indices = @transform_6, window_bounds = array<i64: 1, 128>}, {pipeline_mode = #tpu.pipeline_mode<synchronous>, transform_indices = @transform_7, window_bounds = array<i64: 1, 128>}, {pipeline_mode = #tpu.pipeline_mode<synchronous>, transform_indices = @transform_8, window_bounds = array<i64: 1, 1>}, {transform_indices = @transform_9, window_bounds = array<i64: 8, 1>}]} {
    %c0 = arith.constant 0 : index
    %c0_0 = arith.constant 0 : index
    %c0_1 = arith.constant 0 : index
    %0 = vector.load %arg1[%c0, %c0_0, %c0_1] : memref<8x8x128xf32, #tpu.memory_space<vmem>>, vector<8x8x128xf32>
    %1 = vector.shape_cast %0 : vector<8x8x128xf32> to vector<64x128xf32>
    %c63_i32 = arith.constant 63 : i32
    %2 = tpu.dynamic_rotate %1 by %c63_i32 dim 0 : vector<64x128xf32>, i32 -> vector<64x128xf32>
    %3 = arith.truncf %1 : vector<64x128xf32> to vector<64x128xbf16>
    %4 = arith.truncf %2 : vector<64x128xf32> to vector<64x128xbf16>
    %5 = tpu.concatenate %3, %4 in 1 : vector<64x128xbf16>, vector<64x128xbf16> -> vector<64x256xbf16>
    %c0_2 = arith.constant 0 : index
    %c0_3 = arith.constant 0 : index
    %6 = vector.load %arg2[%c0_2, %c0_3] : memref<256x128xbf16, #tpu.memory_space<vmem>>, vector<256x128xbf16>
    %cst = arith.constant dense<0.000000e+00> : vector<64x128xf32>
    %7 = tpu.matmul %5, %6, %cst {dimension_numbers = #tpu.dot_dimension_numbers<[1], [0], [0], [1], [0, 0, 1, 1], [], []>} : vector<64x256xbf16>, vector<256x128xbf16>, vector<64x128xf32> -> vector<64x128xf32>
    %c0_4 = arith.constant 0 : index
    %c0_5 = arith.constant 0 : index
    %8 = vector.load %arg3[%c0_4, %c0_5] : memref<1x128xf32, #tpu.memory_space<vmem>>, vector<1x128xf32>
    %9 = vector.broadcast %8 : vector<1x128xf32> to vector<64x128xf32>
    %10 = arith.addf %7, %9 : vector<64x128xf32>
    %cst_6 = arith.constant 0.000000e+00 : f32
    %11 = vector.broadcast %cst_6 : f32 to vector<64x128xf32>
    %12 = arith.maximumf %10, %11 : vector<64x128xf32>
    %c63_i32_7 = arith.constant 63 : i32
    %13 = tpu.dynamic_rotate %12 by %c63_i32_7 dim 0 : vector<64x128xf32>, i32 -> vector<64x128xf32>
    %14 = arith.truncf %12 : vector<64x128xf32> to vector<64x128xbf16>
    %15 = arith.truncf %13 : vector<64x128xf32> to vector<64x128xbf16>
    %16 = tpu.concatenate %14, %15 in 1 : vector<64x128xbf16>, vector<64x128xbf16> -> vector<64x256xbf16>
    %c0_8 = arith.constant 0 : index
    %c0_9 = arith.constant 0 : index
    %17 = vector.load %arg4[%c0_8, %c0_9] : memref<256x128xbf16, #tpu.memory_space<vmem>>, vector<256x128xbf16>
    %cst_10 = arith.constant dense<0.000000e+00> : vector<64x128xf32>
    %18 = tpu.matmul %16, %17, %cst_10 {dimension_numbers = #tpu.dot_dimension_numbers<[1], [0], [0], [1], [0, 0, 1, 1], [], []>} : vector<64x256xbf16>, vector<256x128xbf16>, vector<64x128xf32> -> vector<64x128xf32>
    %c0_11 = arith.constant 0 : index
    %c0_12 = arith.constant 0 : index
    %19 = vector.load %arg5[%c0_11, %c0_12] : memref<1x128xf32, #tpu.memory_space<vmem>>, vector<1x128xf32>
    %20 = vector.broadcast %19 : vector<1x128xf32> to vector<64x128xf32>
    %21 = arith.addf %18, %20 : vector<64x128xf32>
    %cst_13 = arith.constant 0.000000e+00 : f32
    %22 = vector.broadcast %cst_13 : f32 to vector<64x128xf32>
    %23 = arith.maximumf %21, %22 : vector<64x128xf32>
    %c63_i32_14 = arith.constant 63 : i32
    %24 = tpu.dynamic_rotate %23 by %c63_i32_14 dim 0 : vector<64x128xf32>, i32 -> vector<64x128xf32>
    %25 = arith.truncf %23 : vector<64x128xf32> to vector<64x128xbf16>
    %26 = arith.truncf %24 : vector<64x128xf32> to vector<64x128xbf16>
    %27 = tpu.concatenate %25, %26 in 1 : vector<64x128xbf16>, vector<64x128xbf16> -> vector<64x256xbf16>
    %c0_15 = arith.constant 0 : index
    %c0_16 = arith.constant 0 : index
    %28 = vector.load %arg6[%c0_15, %c0_16] : memref<256x128xbf16, #tpu.memory_space<vmem>>, vector<256x128xbf16>
    %cst_17 = arith.constant dense<0.000000e+00> : vector<64x128xf32>
    %29 = tpu.matmul %27, %28, %cst_17 {dimension_numbers = #tpu.dot_dimension_numbers<[1], [0], [0], [1], [0, 0, 1, 1], [], []>} : vector<64x256xbf16>, vector<256x128xbf16>, vector<64x128xf32> -> vector<64x128xf32>
    %c0_18 = arith.constant 0 : index
    %c0_19 = arith.constant 0 : index
    %30 = vector.load %arg7[%c0_18, %c0_19] : memref<1x128xf32, #tpu.memory_space<vmem>>, vector<1x128xf32>
    %31 = vector.broadcast %30 : vector<1x128xf32> to vector<64x128xf32>
    %32 = arith.addf %29, %31 : vector<64x128xf32>
    %cst_20 = arith.constant 0.000000e+00 : f32
    %33 = vector.broadcast %cst_20 : f32 to vector<64x128xf32>
    %34 = arith.maximumf %32, %33 : vector<64x128xf32>
    %35 = vector.shape_cast %34 : vector<64x128xf32> to vector<8x8x128xf32>
    %36 = tpu.iota {dimensions = array<i32: 1>} : vector<8x8x128xi32>
    %c5_i32 = arith.constant 5 : i32
    %37 = vector.broadcast %c5_i32 : i32 to vector<8x8x128xi32>
    %38 = arith.cmpi slt, %36, %37 : vector<8x8x128xi32>
    %cst_21 = arith.constant 0.000000e+00 : f32
    %39 = vector.broadcast %cst_21 : f32 to vector<8x8x128xf32>
    %40 = arith.select %38, %35, %39 : vector<8x8x128xi1>, vector<8x8x128xf32>
    %cst_22 = arith.constant dense<0xFF800000> : vector<8x128xf32>
    %41 = vector.multi_reduction <maximumf>, %40, %cst_22 [1] : vector<8x8x128xf32> to vector<8x128xf32>
    %c0_23 = arith.constant 0 : index
    %c0_24 = arith.constant 0 : index
    %42 = vector.load %arg8[%c0_23, %c0_24] : memref<1x128xf32, #tpu.memory_space<vmem>>, vector<1x128xf32>
    %43 = vector.broadcast %42 : vector<1x128xf32> to vector<8x128xf32>
    %44 = arith.mulf %41, %43 : vector<8x128xf32>
    %cst_25 = arith.constant dense<0.000000e+00> : vector<8xf32>
    %45 = vector.multi_reduction <add>, %44, %cst_25 [1] : vector<8x128xf32> to vector<8xf32>
    %46 = vector.shape_cast %45 : vector<8xf32> to vector<8x1xf32>
    %c0_26 = arith.constant 0 : index
    %c0_27 = arith.constant 0 : index
    %47 = vector.load %arg9[%c0_26, %c0_27] : memref<1x1xf32, #tpu.memory_space<vmem>>, vector<1x1xf32>
    %48 = vector.broadcast %47 : vector<1x1xf32> to vector<8x1xf32>
    %49 = arith.addf %46, %48 : vector<8x1xf32>
    %50 = arith.negf %49 : vector<8x1xf32>
    %51 = math.exp %50 : vector<8x1xf32>
    %cst_28 = arith.constant 1.000000e+00 : f32
    %52 = vector.broadcast %cst_28 : f32 to vector<8x1xf32>
    %53 = arith.addf %52, %51 : vector<8x1xf32>
    %54 = arith.divf %52, %53 : vector<8x1xf32>
    %c0_29 = arith.constant 0 : index
    %c0_30 = arith.constant 0 : index
    %55 = vector.load %arg10[%c0_29, %c0_30] : memref<8x1xf32, #tpu.memory_space<vmem>>, vector<8x1xf32>
    tpu.vector_store %arg10[%c0_29, %c0_30], %54 {strides = array<i32>} : memref<8x1xf32, #tpu.memory_space<vmem>>, vector<8x1xf32>,
    return
  }
  func.func @transform_0(%arg0: i32) -> (i32, i32, i32) {
    %c0_i32 = arith.constant 0 : i32
    %c0_i32_0 = arith.constant 0 : i32
    %c0_i32_1 = arith.constant 0 : i32
    return %arg0, %c0_i32, %c0_i32_0 : i32, i32, i32
  }
  func.func @transform_1(%arg0: i32) -> (i32, i32) {
    %c0_i32 = arith.constant 0 : i32
    %c0_i32_0 = arith.constant 0 : i32
    %c0_i32_1 = arith.constant 0 : i32
    return %c0_i32, %c0_i32_0 : i32, i32
  }
  func.func @transform_2(%arg0: i32) -> (i32, i32) {
    %c0_i32 = arith.constant 0 : i32
    %c0_i32_0 = arith.constant 0 : i32
    %c0_i32_1 = arith.constant 0 : i32
    return %c0_i32, %c0_i32_0 : i32, i32
  }
  func.func @transform_3(%arg0: i32) -> (i32, i32) {
    %c0_i32 = arith.constant 0 : i32
    %c0_i32_0 = arith.constant 0 : i32
    %c0_i32_1 = arith.constant 0 : i32
    return %c0_i32, %c0_i32_0 : i32, i32
  }
  func.func @transform_4(%arg0: i32) -> (i32, i32) {
    %c0_i32 = arith.constant 0 : i32
    %c0_i32_0 = arith.constant 0 : i32
    %c0_i32_1 = arith.constant 0 : i32
    return %c0_i32, %c0_i32_0 : i32, i32
  }
  func.func @transform_5(%arg0: i32) -> (i32, i32) {
    %c0_i32 = arith.constant 0 : i32
    %c0_i32_0 = arith.constant 0 : i32
    %c0_i32_1 = arith.constant 0 : i32
    return %c0_i32, %c0_i32_0 : i32, i32
  }
  func.func @transform_6(%arg0: i32) -> (i32, i32) {
    %c0_i32 = arith.constant 0 : i32
    %c0_i32_0 = arith.constant 0 : i32
    %c0_i32_1 = arith.constant 0 : i32
    return %c0_i32, %c0_i32_0 : i32, i32
  }
  func.func @transform_7(%arg0: i32) -> (i32, i32) {
    %c0_i32 = arith.constant 0 : i32
    %c0_i32_0 = arith.constant 0 : i32
    %c0_i32_1 = arith.constant 0 : i32
    return %c0_i32, %c0_i32_0 : i32, i32
  }
  func.func @transform_8(%arg0: i32) -> (i32, i32) {
    %c0_i32 = arith.constant 0 : i32
    %c0_i32_0 = arith.constant 0 : i32
    %c0_i32_1 = arith.constant 0 : i32
    return %c0_i32, %c0_i32_0 : i32, i32
  }
  func.func @transform_9(%arg0: i32) -> (i32, i32) {
    %c0_i32 = arith.constant 0 : i32
    %c0_i32_0 = arith.constant 0 : i32
    return %arg0, %c0_i32 : i32, i32
  }
}

</mosaic_0001>

<llo_original>
// kernel: tpu_custom_call.1
$region0: #{tpu_custom_call.1}
  #allocation0 [shape = 'u32[]', space=smem, size = 0x4, offset = 0x4, fixed_abs, tag = 'smem constant byte address 0x4 - core index']
  #allocation1 [shape = 'u32[144,128]{1,0:T(1,128)}', space=vmem, size = 0x12000, scoped, tag = 'internal scratch']
  #allocation2 [shape = 'f32[1,1]{1,0:T(1,128)S(1)}', space=vmem, size = 0x200, scoped, tag = 'scoped memory for tpu_custom_call.1']
  %s0 = inlined_call_operand.hbm [shape: f32[16,8,128], index: 0, kind: input, shape index: {}]
  %s1 = inlined_call_operand.hbm [shape: bf16[256,128], index: 1, kind: input, shape index: {}]
  %s2 = inlined_call_operand.vmem [shape: f32[1,128], index: 2, kind: input, shape index: {}]
  %s3 = inlined_call_operand.hbm [shape: bf16[256,128], index: 3, kind: input, shape index: {}]
  %s4 = inlined_call_operand.vmem [shape: f32[1,128], index: 4, kind: input, shape index: {}]
  %s5 = inlined_call_operand.hbm [shape: bf16[256,128], index: 5, kind: input, shape index: {}]
  %s6 = inlined_call_operand.vmem [shape: f32[1,128], index: 6, kind: input, shape index: {}]
  %s7 = inlined_call_operand.vmem [shape: f32[1,128], index: 7, kind: input, shape index: {}]
  %s8 = inlined_call_operand.<no memory space> [shape: f32[1,1], index: 8, kind: input, shape index: {}]
  %s9 = inlined_call_operand.vmem [shape: f32[16,1], index: 9, kind: output, shape index: {}]
  %s10 = sld [smem:[#allocation0]]
  $region85: #{tpu_custom_call.1} parent=0
    _
  %s12 = ssub.s32 1, %s10
  %s13 = scalar_select 0, %s12, %s10
  %v14 = vstv %s8
  %15 = vst [vmem:[#allocation2] sm:$0x1] %v14
  $region1: #{tpu_custom_call.1} parent=0
    #allocation3 [shape = 'u8[65536]{0}', space=vmem, size = 0x10000, scoped, tag = 'input window, operand 0']
    #allocation4 [shape = 's32[2]{0}', space=sflag, size = 0x8, scoped, tag = 'scoped memory for tpu_custom_call.1']
    #allocation5 [shape = 'u8[65536]{0}', space=vmem, size = 0x10000, scoped, tag = 'input window, operand 1, single buffered']
    #allocation6 [shape = 's32[1]{0}', space=sflag, size = 0x4, scoped, tag = 'scoped memory for tpu_custom_call.1']
    #allocation7 [shape = 'u8[65536]{0}', space=vmem, size = 0x10000, scoped, tag = 'input window, operand 3, single buffered']
    #allocation8 [shape = 'u8[65536]{0}', space=vmem, size = 0x10000, scoped, tag = 'input window, operand 5, single buffered']
    #allocation9 [shape = 's32[1]{0}', space=sflag, size = 0x4, scoped, tag = 'scoped memory for tpu_custom_call.1']
    %16 = vsyncpa [#allocation4], 0
    %s17 = scalar_lea.sflag [#allocation4], 1
    %18 = vsyncpa %s17, 0
    %19 = vsyncpa [#allocation6], 0
    %20 = vsyncpa [#allocation9], 0
    loop: start=0, step=1, limit=4
    $region2: #{tpu_custom_call.1} parent=1 // loop_pre_header
      _
    $region3: #{tpu_custom_call.1} parent=1 // loop_header
      %s22 = sphi 0, %s26
      %p23 = scmp.ge.s32.totalorder %s22, 4
      %s32 = sphi 0, %s34
      %s35 = sphi 0, %s32
      %s36 = sphi 0, %s35
      %s52 = sphi 0, %s36
      %s56 = sphi 0, %s56
      %s58 = sphi 0, %s56
      %s59 = sphi 0, %s58
      %s73 = sphi 0, %s59
      %s77 = sphi 0, %s77
      %s79 = sphi 0, %s77
      %s80 = sphi 0, %s79
      %s94 = sphi 0, %s80
      %s98 = sphi 0, %s98
      %s100 = sphi 0, %s98
      %s101 = sphi 0, %s100
      %s115 = sphi 0, %s101
      %s119 = sphi 0, %s119
      %s121 = sphi 0, %s119
      %s122 = sphi 0, %s121
      %s136 = sphi 0, %s122
      %s140 = sphi 0, %s140
      %s142 = sphi 0, %s140
      %s143 = sphi 0, %s142
      %s157 = sphi 0, %s143
      %s161 = sphi 0, %s161
      %s163 = sphi 0, %s161
      %s164 = sphi 0, %s163
      %s178 = sphi 0, %s164
      %s182 = sphi 0, %s182
      %s184 = sphi 0, %s182
      %s185 = sphi 0, %s184
      %s199 = sphi 0, %s185
      %s203 = sphi 0, %s203
      %s205 = sphi 0, %s203
      %s206 = sphi 0, %s205
      %s220 = sphi 0, %s206
      %s226 = sphi 0, %s228
      %s229 = sphi 0, %s226
      %s230 = sphi 0, %s229
      %s246 = sphi 0, %s230
    $region4: #{tpu_custom_call.1} parent=1 // loop_header_branch
      %25 = sbr.rel (%p23) target = $region8
    $region5: #{tpu_custom_call.1} parent=1 // loop_body
      %s27 = ssub.s32 %s22, 1
      %s28 = ssub.s32 %s22, 2
      %s29 = sadd.s32 %s22, 1
      %s30 = ssub.s32 %s22, %s29
      %p31 = scmp.eq.s32.totalorder %s30, 0
      %s33 = sadd.s32 %s32, 1
      %s34 = scalar_select %p31, %s32, %s33
      %p37 = pneg %p31
      %p38 = scmp.eq.s32.totalorder %s22, 1
      %p39 = por %p37, %p38
      %p40 = scmp.ne.s32.totalorder %s32, %s35
      %p41 = scmp.eq.s32.totalorder %s22, 0
      %p42 = por %p40, %p41
      %p43 = scmp.ne.s32.totalorder %s32, %s35
      %p44 = scmp.eq.s32.totalorder %s27, 1
      %p45 = por %p43, %p44
      %p46 = scmp.ne.s32.totalorder %s35, %s36
      %p47 = scmp.eq.s32.totalorder %s27, 0
      %p48 = por %p46, %p47
      %p49 = scmp.ne.s32.totalorder %s35, %s36
      %p50 = scmp.eq.s32.totalorder %s28, 1
      %p51 = por %p49, %p50
      %p53 = scmp.ne.s32.totalorder %s36, %s52
      %p54 = scmp.eq.s32.totalorder %s28, 0
      %p55 = por %p53, %p54
      %s57 = sadd.s32 %s56, 1
      %p60 = scmp.eq.s32.totalorder %s22, 1
      %p61 = scmp.ne.s32.totalorder %s56, %s58
      %p62 = scmp.eq.s32.totalorder %s22, 0
      %p63 = por %p61, %p62
      %p64 = scmp.ne.s32.totalorder %s56, %s58
      %p65 = scmp.eq.s32.totalorder %s27, 1
      %p66 = por %p64, %p65
      %p67 = scmp.ne.s32.totalorder %s58, %s59
      %p68 = scmp.eq.s32.totalorder %s27, 0
      %p69 = por %p67, %p68
      %p70 = scmp.ne.s32.totalorder %s58, %s59
      %p71 = scmp.eq.s32.totalorder %s28, 1
      %p72 = por %p70, %p71
      %p74 = scmp.ne.s32.totalorder %s59, %s73
      %p75 = scmp.eq.s32.totalorder %s28, 0
      %p76 = por %p74, %p75
      %s78 = sadd.s32 %s77, 1
      %p81 = scmp.eq.s32.totalorder %s22, 1
      %p82 = scmp.ne.s32.totalorder %s77, %s79
      %p83 = scmp.eq.s32.totalorder %s22, 0
      %p84 = por %p82, %p83
      %p85 = scmp.ne.s32.totalorder %s77, %s79
      %p86 = scmp.eq.s32.totalorder %s27, 1
      %p87 = por %p85, %p86
      %p88 = scmp.ne.s32.totalorder %s79, %s80
      %p89 = scmp.eq.s32.totalorder %s27, 0
      %p90 = por %p88, %p89
      %p91 = scmp.ne.s32.totalorder %s79, %s80
      %p92 = scmp.eq.s32.totalorder %s28, 1
      %p93 = por %p91, %p92
      %p95 = scmp.ne.s32.totalorder %s80, %s94
      %p96 = scmp.eq.s32.totalorder %s28, 0
      %p97 = por %p95, %p96
      %s99 = sadd.s32 %s98, 1
      %p102 = scmp.eq.s32.totalorder %s22, 1
      %p103 = scmp.ne.s32.totalorder %s98, %s100
      %p104 = scmp.eq.s32.totalorder %s22, 0
      %p105 = por %p103, %p104
      %p106 = scmp.ne.s32.totalorder %s98, %s100
      %p107 = scmp.eq.s32.totalorder %s27, 1
      %p108 = por %p106, %p107
      %p109 = scmp.ne.s32.totalorder %s100, %s101
      %p110 = scmp.eq.s32.totalorder %s27, 0
      %p111 = por %p109, %p110
      %p112 = scmp.ne.s32.totalorder %s100, %s101
      %p113 = scmp.eq.s32.totalorder %s28, 1
      %p114 = por %p112, %p113
      %p116 = scmp.ne.s32.totalorder %s101, %s115
      %p117 = scmp.eq.s32.totalorder %s28, 0
      %p118 = por %p116, %p117
      %s120 = sadd.s32 %s119, 1
      %p123 = scmp.eq.s32.totalorder %s22, 1
      %p124 = scmp.ne.s32.totalorder %s119, %s121
      %p125 = scmp.eq.s32.totalorder %s22, 0
      %p126 = por %p124, %p125
      %p127 = scmp.ne.s32.totalorder %s119, %s121
      %p128 = scmp.eq.s32.totalorder %s27, 1
      %p129 = por %p127, %p128
      %p130 = scmp.ne.s32.totalorder %s121, %s122
      %p131 = scmp.eq.s32.totalorder %s27, 0
      %p132 = por %p130, %p131
      %p133 = scmp.ne.s32.totalorder %s121, %s122
      %p134 = scmp.eq.s32.totalorder %s28, 1
      %p135 = por %p133, %p134
      %p137 = scmp.ne.s32.totalorder %s122, %s136
      %p138 = scmp.eq.s32.totalorder %s28, 0
      %p139 = por %p137, %p138
      %s141 = sadd.s32 %s140, 1
      %p144 = scmp.eq.s32.totalorder %s22, 1
      %p145 = scmp.ne.s32.totalorder %s140, %s142
      %p146 = scmp.eq.s32.totalorder %s22, 0
      %p147 = por %p145, %p146
      %p148 = scmp.ne.s32.totalorder %s140, %s142
      %p149 = scmp.eq.s32.totalorder %s27, 1
      %p150 = por %p148, %p149
      %p151 = scmp.ne.s32.totalorder %s142, %s143
      %p152 = scmp.eq.s32.totalorder %s27, 0
      %p153 = por %p151, %p152
      %p154 = scmp.ne.s32.totalorder %s142, %s143
      %p155 = scmp.eq.s32.totalorder %s28, 1
      %p156 = por %p154, %p155
      %p158 = scmp.ne.s32.totalorder %s143, %s157
      %p159 = scmp.eq.s32.totalorder %s28, 0
      %p160 = por %p158, %p159
      %s162 = sadd.s32 %s161, 1
      %p165 = scmp.eq.s32.totalorder %s22, 1
      %p166 = scmp.ne.s32.totalorder %s161, %s163
      %p167 = scmp.eq.s32.totalorder %s22, 0
      %p168 = por %p166, %p167
      %p169 = scmp.ne.s32.totalorder %s161, %s163
      %p170 = scmp.eq.s32.totalorder %s27, 1
      %p171 = por %p169, %p170
      %p172 = scmp.ne.s32.totalorder %s163, %s164
      %p173 = scmp.eq.s32.totalorder %s27, 0
      %p174 = por %p172, %p173
      %p175 = scmp.ne.s32.totalorder %s163, %s164
      %p176 = scmp.eq.s32.totalorder %s28, 1
      %p177 = por %p175, %p176
      %p179 = scmp.ne.s32.totalorder %s164, %s178
      %p180 = scmp.eq.s32.totalorder %s28, 0
      %p181 = por %p179, %p180
      %s183 = sadd.s32 %s182, 1
      %p186 = scmp.eq.s32.totalorder %s22, 1
      %p187 = scmp.ne.s32.totalorder %s182, %s184
      %p188 = scmp.eq.s32.totalorder %s22, 0
      %p189 = por %p187, %p188
      %p190 = scmp.ne.s32.totalorder %s182, %s184
      %p191 = scmp.eq.s32.totalorder %s27, 1
      %p192 = por %p190, %p191
      %p193 = scmp.ne.s32.totalorder %s184, %s185
      %p194 = scmp.eq.s32.totalorder %s27, 0
      %p195 = por %p193, %p194
      %p196 = scmp.ne.s32.totalorder %s184, %s185
      %p197 = scmp.eq.s32.totalorder %s28, 1
      %p198 = por %p196, %p197
      %p200 = scmp.ne.s32.totalorder %s185, %s199
      %p201 = scmp.eq.s32.totalorder %s28, 0
      %p202 = por %p200, %p201
      %s204 = sadd.s32 %s203, 1
      %p207 = scmp.eq.s32.totalorder %s22, 1
      %p208 = scmp.ne.s32.totalorder %s203, %s205
      %p209 = scmp.eq.s32.totalorder %s22, 0
      %p210 = por %p208, %p209
      %p211 = scmp.ne.s32.totalorder %s203, %s205
      %p212 = scmp.eq.s32.totalorder %s27, 1
      %p213 = por %p211, %p212
      %p214 = scmp.ne.s32.totalorder %s205, %s206
      %p215 = scmp.eq.s32.totalorder %s27, 0
      %p216 = por %p214, %p215
      %p217 = scmp.ne.s32.totalorder %s205, %s206
      %p218 = scmp.eq.s32.totalorder %s28, 1
      %p219 = por %p217, %p218
      %p221 = scmp.ne.s32.totalorder %s206, %s220
      %p222 = scmp.eq.s32.totalorder %s28, 0
      %p223 = por %p221, %p222
      %s224 = ssub.s32 %s22, %s29
      %p225 = scmp.eq.s32.totalorder %s224, 0
      %s227 = sadd.s32 %s226, 1
      %s228 = scalar_select %p225, %s226, %s227
      %p231 = pneg %p225
      %p232 = scmp.eq.s32.totalorder %s22, 1
      %p233 = por %p231, %p232
      %p234 = scmp.ne.s32.totalorder %s226, %s229
      %p235 = scmp.eq.s32.totalorder %s22, 0
      %p236 = por %p234, %p235
      %p237 = scmp.ne.s32.totalorder %s226, %s229
      %p238 = scmp.eq.s32.totalorder %s27, 1
      %p239 = por %p237, %p238
      %p240 = scmp.ne.s32.totalorder %s229, %s230
      %p241 = scmp.eq.s32.totalorder %s27, 0
      %p242 = por %p240, %p241
      %p243 = scmp.ne.s32.totalorder %s229, %s230
      %p244 = scmp.eq.s32.totalorder %s28, 1
      %p245 = por %p243, %p244
      %p247 = scmp.ne.s32.totalorder %s230, %s246
      %p248 = scmp.eq.s32.totalorder %s28, 0
      %p249 = por %p247, %p248
      %p250 = scmp.le.s32.totalorder 1, %s22
      %p251 = scmp.lt.s32.totalorder %s22, 3
      %p252 = pnand %p250, %p251
      %p253 = pneg %p252
      // Predicated region
      $region9: #{tpu_custom_call.1} parent=5 // pred_check
        _
      $region10: #{tpu_custom_call.1} parent=5 // pred_check_branch
        %255 = sbr.rel (%p252) target = $region12
      $region11: #{tpu_custom_call.1} parent=5 // pred_region
        %s256 = ssub.s32 %s22, 1
        // Predicated region
        $region13: #{tpu_custom_call.1} parent=11 // pred_check
          %p257 = pneg %p69
        $region14: #{tpu_custom_call.1} parent=11 // pred_check_branch
          %259 = sbr.rel (%p257) target = $region16
        $region15: #{tpu_custom_call.1} parent=11 // pred_region
          %s261 = ssub.s32 2048, 2048
          %262 = vsyncadd [#allocation6], %s261
          %s263 = sshll.u32 [#allocation5], 4
          %s264 = int_to_ptr.vmem [resolvable:$true] %s263
          %269 = dma.hbm_to_vmem [thread:$0]  %s1, 2048, %s264, [#allocation6], 64, 64, 4
        $region16: #{tpu_custom_call.1} parent=11 // pred_fallthru
          _
        // Predicated region
        $region17: #{tpu_custom_call.1} parent=11 // pred_check
          %p270 = pneg %p90
        $region18: #{tpu_custom_call.1} parent=11 // pred_check_branch
          %272 = sbr.rel (%p270) target = $region20
        $region19: #{tpu_custom_call.1} parent=11 // pred_region
          _
        $region20: #{tpu_custom_call.1} parent=11 // pred_fallthru
          _
        // Predicated region
        $region21: #{tpu_custom_call.1} parent=11 // pred_check
          %p273 = pneg %p111
        $region22: #{tpu_custom_call.1} parent=11 // pred_check_branch
          %275 = sbr.rel (%p273) target = $region24
        $region23: #{tpu_custom_call.1} parent=11 // pred_region
          %s277 = ssub.s32 2048, 2048
          %278 = vsyncadd [#allocation6], %s277
          %s279 = sshll.u32 [#allocation7], 4
          %s280 = int_to_ptr.vmem [resolvable:$true] %s279
          %285 = dma.hbm_to_vmem [thread:$0]  %s3, 2048, %s280, [#allocation6], 64, 64, 4
        $region24: #{tpu_custom_call.1} parent=11 // pred_fallthru
          _
        // Predicated region
        $region25: #{tpu_custom_call.1} parent=11 // pred_check
          %p286 = pneg %p132
        $region26: #{tpu_custom_call.1} parent=11 // pred_check_branch
          %288 = sbr.rel (%p286) target = $region28
        $region27: #{tpu_custom_call.1} parent=11 // pred_region
          _
        $region28: #{tpu_custom_call.1} parent=11 // pred_fallthru
          _
        // Predicated region
        $region29: #{tpu_custom_call.1} parent=11 // pred_check
          %p289 = pneg %p153
        $region30: #{tpu_custom_call.1} parent=11 // pred_check_branch
          %291 = sbr.rel (%p289) target = $region32
        $region31: #{tpu_custom_call.1} parent=11 // pred_region
          %s293 = ssub.s32 2048, 2048
          %294 = vsyncadd [#allocation9], %s293
          %s295 = sshll.u32 [#allocation8], 4
          %s296 = int_to_ptr.vmem [resolvable:$true] %s295
          %301 = dma.hbm_to_vmem [thread:$0]  %s5, 2048, %s296, [#allocation9], 64, 64, 4
        $region32: #{tpu_custom_call.1} parent=11 // pred_fallthru
          _
        // Predicated region
        $region33: #{tpu_custom_call.1} parent=11 // pred_check
          %p302 = pneg %p174
        $region34: #{tpu_custom_call.1} parent=11 // pred_check_branch
          %304 = sbr.rel (%p302) target = $region36
        $region35: #{tpu_custom_call.1} parent=11 // pred_region
          _
        $region36: #{tpu_custom_call.1} parent=11 // pred_fallthru
          _
        // Predicated region
        $region37: #{tpu_custom_call.1} parent=11 // pred_check
          %p305 = pneg %p195
        $region38: #{tpu_custom_call.1} parent=11 // pred_check_branch
          %307 = sbr.rel (%p305) target = $region40
        $region39: #{tpu_custom_call.1} parent=11 // pred_region
          _
        $region40: #{tpu_custom_call.1} parent=11 // pred_fallthru
          _
        // Predicated region
        $region41: #{tpu_custom_call.1} parent=11 // pred_check
          %p308 = pneg %p216
        $region42: #{tpu_custom_call.1} parent=11 // pred_check_branch
          %310 = sbr.rel (%p308) target = $region44
        $region43: #{tpu_custom_call.1} parent=11 // pred_region
          _
        $region44: #{tpu_custom_call.1} parent=11 // pred_fallthru
          _
      $region12: #{tpu_custom_call.1} parent=5 // pred_fallthru
        _
      %p311 = scmp.lt.s32.totalorder %s22, 2
      // Predicated region
      $region45: #{tpu_custom_call.1} parent=5 // pred_check
        %p312 = pneg %p311
      $region46: #{tpu_custom_call.1} parent=5 // pred_check_branch
        %314 = sbr.rel (%p312) target = $region48
      $region47: #{tpu_custom_call.1} parent=5 // pred_region
        // Predicated region
        $region49: #{tpu_custom_call.1} parent=47 // pred_check
          %p315 = pneg %p42
        $region50: #{tpu_custom_call.1} parent=47 // pred_check_branch
          %317 = sbr.rel (%p315) target = $region52
        $region51: #{tpu_custom_call.1} parent=47 // pred_region
          %s318 = sand.u32 %s32, 1
          %s319 = scalar_lea.sflag [#allocation4], %s318
          %s320 = sand.u32 %s32, 1
          %s321 = smul.addr %s320, 64
          %s322 = scalar_lea.vmem [#allocation3], %s321
          %s323 = smul.u32 8, %s22
          %s325 = ssub.s32 1024, 1024
          %326 = vsyncadd %s319, %s325
          %s327 = smul.addr %s323, 128
          %s328 = scalar_lea.hbm %s0, %s327
          %s329 = sshll.u32 %s322, 4
          %s330 = int_to_ptr.vmem [resolvable:$true] %s329
          %335 = dma.hbm_to_vmem [thread:$0]  %s328, 1024, %s330, %s319, 128, 128, 8
        $region52: #{tpu_custom_call.1} parent=47 // pred_fallthru
          _
      $region48: #{tpu_custom_call.1} parent=5 // pred_fallthru
        _
      %p336 = scmp.le.s32.totalorder 1, %s22
      %p337 = scmp.lt.s32.totalorder %s22, 3
      %p338 = pnand %p336, %p337
      %p339 = pneg %p338
      // Predicated region
      $region53: #{tpu_custom_call.1} parent=5 // pred_check
        _
      $region54: #{tpu_custom_call.1} parent=5 // pred_check_branch
        %341 = sbr.rel (%p338) target = $region56
      $region55: #{tpu_custom_call.1} parent=5 // pred_region
        %s342 = ssub.s32 %s22, 1
        %s343 = sand.u32 %s35, 1
        %s344 = scalar_lea.sflag [#allocation4], %s343
        %s345 = sand.u32 %s35, 1
        %s346 = smul.addr %s345, 64
        %s347 = scalar_lea.vmem [#allocation3], %s346
        // Predicated region
        $region57: #{tpu_custom_call.1} parent=55 // pred_check
          %p348 = pneg %p48
        $region58: #{tpu_custom_call.1} parent=55 // pred_check_branch
          %350 = sbr.rel (%p348) target = $region60
        $region59: #{tpu_custom_call.1} parent=55 // pred_region
          %351 = dma.done %s344, 1024
        $region60: #{tpu_custom_call.1} parent=55 // pred_fallthru
          _
        // Predicated region
        $region61: #{tpu_custom_call.1} parent=55 // pred_check
          %p352 = pneg %p69
        $region62: #{tpu_custom_call.1} parent=55 // pred_check_branch
          %354 = sbr.rel (%p352) target = $region64
        $region63: #{tpu_custom_call.1} parent=55 // pred_region
          %355 = dma.done [#allocation6], 2048
        $region64: #{tpu_custom_call.1} parent=55 // pred_fallthru
          _
        // Predicated region
        $region65: #{tpu_custom_call.1} parent=55 // pred_check
          %p356 = pneg %p111
        $region66: #{tpu_custom_call.1} parent=55 // pred_check_branch
          %358 = sbr.rel (%p356) target = $region68
        $region67: #{tpu_custom_call.1} parent=55 // pred_region
          %359 = dma.done [#allocation6], 2048
        $region68: #{tpu_custom_call.1} parent=55 // pred_fallthru
          _
        // Predicated region
        $region69: #{tpu_custom_call.1} parent=55 // pred_check
          %p360 = pneg %p153
        $region70: #{tpu_custom_call.1} parent=55 // pred_check_branch
          %362 = sbr.rel (%p360) target = $region72
        $region71: #{tpu_custom_call.1} parent=55 // pred_region
          %363 = dma.done [#allocation9], 2048
        $region72: #{tpu_custom_call.1} parent=55 // pred_fallthru
          _
        %s364 = sand.u32 %s35, 1
        %s365 = scalar_lea.sflag [#allocation4], %s364
        %s366 = sand.u32 %s35, 1
        %s367 = smul.addr %s366, 64
        %s368 = scalar_lea.vmem [#allocation3], %s367
        %p369 = pneg %p48
        %p370 = pneg %p45
        %p371 = pneg %p69
        %p372 = pneg %p66
        %p373 = pneg %p90
        %p374 = pneg %p87
        %p375 = pneg %p111
        %p376 = pneg %p108
        %p377 = pneg %p132
        %p378 = pneg %p129
        %p379 = pneg %p153
        %p380 = pneg %p150
        %p381 = pneg %p174
        %p382 = pneg %p171
        %p383 = pneg %p195
        %p384 = pneg %p192
        %p385 = pneg %p216
        %p386 = pneg %p213
        %p387 = pneg %p242
        %p388 = pneg %p239
        %p389 = scmp.lt.s32.totalorder %s27, 1
        %s390 = scalar_select %p389, %s27, 1
        %s391 = smul.addr %s390, 8
        %s392 = scalar_lea.vmem %s9, %s391
        %s393 = smul.u32 8, %s27
        %p394 = scmp.lt.s32.totalorder %s27, 1
        %s395 = scalar_select %p394, %s27, 1
        %s396 = smul.addr %s395, 8
        %s397 = scalar_lea.vmem %s9, %s396
        %v399 = vld [vmem:[%s347] sm:$0xff]
        %v400 = vld [vmem:[%s347 + $0x8] sm:$0xff]
        %v401 = vld [vmem:[%s347 + $0x10] sm:$0xff]
        %v402 = vld [vmem:[%s347 + $0x18] sm:$0xff]
        %v403 = vld [vmem:[%s347 + $0x20] sm:$0xff]
        %v404 = vld [vmem:[%s347 + $0x28] sm:$0xff]
        %v405 = vld [vmem:[%s347 + $0x30] sm:$0xff]
        %v406 = vld [vmem:[%s347 + $0x38] sm:$0xff]
        %v407 = vrot.slane %v399, 1
        %v408 = vrot.slane %v400, 1
        %v409 = vrot.slane %v401, 1
        %v410 = vrot.slane %v402, 1
        %v411 = vrot.slane %v403, 1
        %v412 = vrot.slane %v404, 1
        %v413 = vrot.slane %v405, 1
        %v414 = vrot.slane %v406, 1
        %v415 = vlaneseq
        %v416 = vshrl.u32 %v415, 7
        %vm417 = vcmp.lt.s32.totalorder %v416, 7
        %v418 = vsel %vm417, %v413, %v414
        %v419 = vsel %vm417, %v412, %v413
        %v420 = vsel %vm417, %v411, %v412
        %v421 = vsel %vm417, %v410, %v411
        %v422 = vsel %vm417, %v409, %v410
        %v423 = vsel %vm417, %v408, %v409
        %v424 = vsel %vm417, %v407, %v408
        %v425 = vsel %vm417, %v414, %v407
        %v426 = vpack.c.bf16 %v400, %v399
        %v427 = vpack.c.bf16 %v402, %v401
        %v428 = vpack.c.bf16 %v404, %v403
        %v429 = vpack.c.bf16 %v406, %v405
        %v430 = vpack.c.bf16 %v423, %v424
        %v431 = vpack.c.bf16 %v421, %v422
        %v432 = vpack.c.bf16 %v419, %v420
        %v433 = vpack.c.bf16 %v425, %v418
        %v434 = vld [vmem:[#allocation5] sm:$0xf]
        %v435 = vld [vmem:[#allocation5 + $0x4] sm:$0xf]
        %v436 = vld [vmem:[#allocation5 + $0x8] sm:$0xf]
        %v437 = vld [vmem:[#allocation5 + $0xc] sm:$0xf]
        %v438 = vld [vmem:[#allocation5 + $0x10] sm:$0xf]
        %v439 = vld [vmem:[#allocation5 + $0x14] sm:$0xf]
        %v440 = vld [vmem:[#allocation5 + $0x18] sm:$0xf]
        %v441 = vld [vmem:[#allocation5 + $0x1c] sm:$0xf]
        %v442 = vld [vmem:[#allocation5 + $0x20] sm:$0xf]
        %v443 = vld [vmem:[#allocation5 + $0x24] sm:$0xf]
        %v444 = vld [vmem:[#allocation5 + $0x28] sm:$0xf]
        %v445 = vld [vmem:[#allocation5 + $0x2c] sm:$0xf]
        %v446 = vld [vmem:[#allocation5 + $0x30] sm:$0xf]
        %v447 = vld [vmem:[#allocation5 + $0x34] sm:$0xf]
        %v448 = vld [vmem:[#allocation5 + $0x38] sm:$0xf]
        %v449 = vld [vmem:[#allocation5 + $0x3c] sm:$0xf]
        %v450 = vld [vmem:[#allocation5 + $0x40] sm:$0xf]
        %v451 = vld [vmem:[#allocation5 + $0x44] sm:$0xf]
        %v452 = vld [vmem:[#allocation5 + $0x48] sm:$0xf]
        %v453 = vld [vmem:[#allocation5 + $0x4c] sm:$0xf]
        %v454 = vld [vmem:[#allocation5 + $0x50] sm:$0xf]
        %v455 = vld [vmem:[#allocation5 + $0x54] sm:$0xf]
        %v456 = vld [vmem:[#allocation5 + $0x58] sm:$0xf]
        %v457 = vld [vmem:[#allocation5 + $0x5c] sm:$0xf]
        %v458 = vld [vmem:[#allocation5 + $0x60] sm:$0xf]
        %v459 = vld [vmem:[#allocation5 + $0x64] sm:$0xf]
        %v460 = vld [vmem:[#allocation5 + $0x68] sm:$0xf]
        %v461 = vld [vmem:[#allocation5 + $0x6c] sm:$0xf]
        %v462 = vld [vmem:[#allocation5 + $0x70] sm:$0xf]
        %v463 = vld [vmem:[#allocation5 + $0x74] sm:$0xf]
        %v464 = vld [vmem:[#allocation5 + $0x78] sm:$0xf]
        %v465 = vld [vmem:[#allocation5 + $0x7c] sm:$0xf]
        %v466 = vld [vmem:[%s2] sm:$0x1]
        %v468 = vlaneseq
        %v469 = vshrl.u32 %v468, 7
        %v470 = vsub.s32 0, %v469
        %v471 = vrot.slane %v466, %v470
        %v505 = vunpack.c.l.b16 %v434
        %v506 = vunpack.c.l.b16 %v435
        %v507 = vunpack.c.l.b16 %v436
        %v508 = vunpack.c.l.b16 %v437
        %v509 = vunpack.c.l.b16 %v438
        %v510 = vunpack.c.l.b16 %v439
        %v511 = vunpack.c.l.b16 %v440
        %v512 = vunpack.c.l.b16 %v441
        %v513 = vunpack.c.l.b16 %v442
        %v514 = vunpack.c.l.b16 %v443
        %v515 = vunpack.c.l.b16 %v444
        %v516 = vunpack.c.l.b16 %v445
        %v517 = vunpack.c.l.b16 %v446
        %v518 = vunpack.c.l.b16 %v447
        %v519 = vunpack.c.l.b16 %v448
        %v520 = vunpack.c.l.b16 %v449
        %v521 = vunpack.c.l.b16 %v450
        %v522 = vunpack.c.l.b16 %v451
        %v523 = vunpack.c.l.b16 %v452
        %v524 = vunpack.c.l.b16 %v453
        %v525 = vunpack.c.l.b16 %v454
        %v526 = vunpack.c.l.b16 %v455
        %v527 = vunpack.c.l.b16 %v456
        %v528 = vunpack.c.l.b16 %v457
        %v529 = vunpack.c.l.b16 %v458
        %v530 = vunpack.c.l.b16 %v459
        %v531 = vunpack.c.l.b16 %v460
        %v532 = vunpack.c.l.b16 %v461
        %v533 = vunpack.c.l.b16 %v462
        %v534 = vunpack.c.l.b16 %v463
        %v535 = vunpack.c.l.b16 %v464
        %v536 = vunpack.c.l.b16 %v465
        %v537 = vpack.c.b16 %v506, %v505
        %v538 = vpack.c.b16 %v508, %v507
        %v539 = vpack.c.b16 %v510, %v509
        %v540 = vpack.c.b16 %v512, %v511
        %v541 = vpack.c.b16 %v514, %v513
        %v542 = vpack.c.b16 %v516, %v515
        %v543 = vpack.c.b16 %v518, %v517
        %v544 = vpack.c.b16 %v520, %v519
        %v545 = vpack.c.b16 %v522, %v521
        %v546 = vpack.c.b16 %v524, %v523
        %v547 = vpack.c.b16 %v526, %v525
        %v548 = vpack.c.b16 %v528, %v527
        %v549 = vpack.c.b16 %v530, %v529
        %v550 = vpack.c.b16 %v532, %v531
        %v551 = vpack.c.b16 %v534, %v533
        %v552 = vpack.c.b16 %v536, %v535
        %569 = vmatprep.subr.bf16.mxu0 0
        %570 = vmatpush1.bf16.msra.mxu0 %v537
        %571 = vmatprep.subr.bf16.mxu0 0
        %572 = vmatpush1.bf16.msra.mxu0 %v538
        %573 = vmatprep.subr.bf16.mxu0 0
        %574 = vmatpush1.bf16.msra.mxu0 %v539
        %575 = vmatprep.subr.bf16.mxu0 0
        %576 = vmatpush1.bf16.msra.mxu0 %v540
        %577 = vmatprep.subr.bf16.mxu0 0
        %578 = vmatpush1.bf16.msra.mxu0 %v541
        %579 = vmatprep.subr.bf16.mxu0 0
        %580 = vmatpush1.bf16.msra.mxu0 %v542
        %581 = vmatprep.subr.bf16.mxu0 0
        %582 = vmatpush1.bf16.msra.mxu0 %v543
        %583 = vmatprep.subr.bf16.mxu0 0
        %584 = vmatpush1.bf16.msra.mxu0 %v544
        %585 = vmatprep.subr.bf16.mxu0 0
        %586 = vmatpush1.bf16.msra.mxu0 %v545
        %587 = vmatprep.subr.bf16.mxu0 0
        %588 = vmatpush1.bf16.msra.mxu0 %v546
        %589 = vmatprep.subr.bf16.mxu0 0
        %590 = vmatpush1.bf16.msra.mxu0 %v547
        %591 = vmatprep.subr.bf16.mxu0 0
        %592 = vmatpush1.bf16.msra.mxu0 %v548
        %593 = vmatprep.subr.bf16.mxu0 0
        %594 = vmatpush1.bf16.msra.mxu0 %v549
        %595 = vmatprep.subr.bf16.mxu0 0
        %596 = vmatpush1.bf16.msra.mxu0 %v550
        %597 = vmatprep.subr.bf16.mxu0 0
        %598 = vmatpush1.bf16.msra.mxu0 %v551
        %599 = vmatprep.subr.bf16.mxu0 0
        %600 = vmatpush1.bf16.msra.mxu0 %v552
        %601 = vmatprep.mubr.bf16.mxu0 %v430
        %602 = vmatmul.mubr.bf16.gmra.mrb[0].mxu0 %v426
        %v603 = vpop.f32.mrb[0].mxu0
        %v604 = vadd.f32 %v471, %v603
        %v605 = vpop.f32.mrb[0].mxu0
        %v606 = vpop.f32.mrb[0].mxu0
        %v607 = vadd.f32 %v471, %v606
        %v608 = vpop.f32.mrb[0].mxu0
        %609 = vmatprep.mubr.bf16.mxu0 %v431
        %610 = vmatmul.mubr.bf16.gmra.mrb[0].mxu0 %v427
        %v611 = vpop.f32.mrb[0].mxu0
        %v612 = vadd.f32 %v471, %v611
        %v613 = vpop.f32.mrb[0].mxu0
        %v614 = vpop.f32.mrb[0].mxu0
        %v615 = vadd.f32 %v471, %v614
        %v616 = vpop.f32.mrb[0].mxu0
        %617 = vmatprep.mubr.bf16.mxu0 %v432
        %618 = vmatmul.mubr.bf16.gmra.mrb[0].mxu0 %v428
        %v619 = vpop.f32.mrb[0].mxu0
        %v620 = vadd.f32 %v471, %v619
        %v621 = vpop.f32.mrb[0].mxu0
        %v622 = vpop.f32.mrb[0].mxu0
        %v623 = vadd.f32 %v471, %v622
        %v624 = vpop.f32.mrb[0].mxu0
        %625 = vmatprep.mubr.bf16.mxu0 %v433
        %626 = vmatmul.mubr.bf16.gmra.mrb[0].mxu0 %v429
        %v627 = vpop.f32.mrb[0].mxu0
        %v628 = vadd.f32 %v471, %v627
        %v629 = vpop.f32.mrb[0].mxu0
        %v630 = vpop.f32.mrb[0].mxu0
        %v631 = vadd.f32 %v471, %v630
        %v632 = vpop.f32.mrb[0].mxu0
        %633 = vdwg.mxu0
        %v634 = vmax.f32 %v604, 0.0
        %v635 = vmax.f32 %v607, 0.0
        %v636 = vmax.f32 %v612, 0.0
        %v637 = vmax.f32 %v615, 0.0
        %v638 = vmax.f32 %v620, 0.0
        %v639 = vmax.f32 %v623, 0.0
        %v640 = vmax.f32 %v628, 0.0
        %v641 = vmax.f32 %v631, 0.0
        %v642 = vrot.slane %v634, 1
        %v643 = vrot.slane %v635, 1
        %v644 = vrot.slane %v636, 1
        %v645 = vrot.slane %v637, 1
        %v646 = vrot.slane %v638, 1
        %v647 = vrot.slane %v639, 1
        %v648 = vrot.slane %v640, 1
        %v649 = vrot.slane %v641, 1
        %v650 = vsel %vm417, %v648, %v649
        %v651 = vsel %vm417, %v647, %v648
        %v652 = vsel %vm417, %v646, %v647
        %v653 = vsel %vm417, %v645, %v646
        %v654 = vsel %vm417, %v644, %v645
        %v655 = vsel %vm417, %v643, %v644
        %v656 = vsel %vm417, %v642, %v643
        %v657 = vsel %vm417, %v649, %v642
        %v658 = vpack.c.bf16 %v635, %v634
        %v659 = vpack.c.bf16 %v637, %v636
        %v660 = vpack.c.bf16 %v639, %v638
        %v661 = vpack.c.bf16 %v641, %v640
        %v662 = vpack.c.bf16 %v655, %v656
        %v663 = vpack.c.bf16 %v653, %v654
        %v664 = vpack.c.bf16 %v651, %v652
        %v665 = vpack.c.bf16 %v657, %v650
        %v666 = vld [vmem:[#allocation7] sm:$0xf]
        %v667 = vld [vmem:[#allocation7 + $0x4] sm:$0xf]
        %v668 = vld [vmem:[#allocation7 + $0x8] sm:$0xf]
        %v669 = vld [vmem:[#allocation7 + $0xc] sm:$0xf]
        %v670 = vld [vmem:[#allocation7 + $0x10] sm:$0xf]
        %v671 = vld [vmem:[#allocation7 + $0x14] sm:$0xf]
        %v672 = vld [vmem:[#allocation7 + $0x18] sm:$0xf]
        %v673 = vld [vmem:[#allocation7 + $0x1c] sm:$0xf]
        %v674 = vld [vmem:[#allocation7 + $0x20] sm:$0xf]
        %v675 = vld [vmem:[#allocation7 + $0x24] sm:$0xf]
        %v676 = vld [vmem:[#allocation7 + $0x28] sm:$0xf]
        %v677 = vld [vmem:[#allocation7 + $0x2c] sm:$0xf]
        %v678 = vld [vmem:[#allocation7 + $0x30] sm:$0xf]
        %v679 = vld [vmem:[#allocation7 + $0x34] sm:$0xf]
        %v680 = vld [vmem:[#allocation7 + $0x38] sm:$0xf]
        %v681 = vld [vmem:[#allocation7 + $0x3c] sm:$0xf]
        %v682 = vld [vmem:[#allocation7 + $0x40] sm:$0xf]
        %v683 = vld [vmem:[#allocation7 + $0x44] sm:$0xf]
        %v684 = vld [vmem:[#allocation7 + $0x48] sm:$0xf]
        %v685 = vld [vmem:[#allocation7 + $0x4c] sm:$0xf]
        %v686 = vld [vmem:[#allocation7 + $0x50] sm:$0xf]
        %v687 = vld [vmem:[#allocation7 + $0x54] sm:$0xf]
        %v688 = vld [vmem:[#allocation7 + $0x58] sm:$0xf]
        %v689 = vld [vmem:[#allocation7 + $0x5c] sm:$0xf]
        %v690 = vld [vmem:[#allocation7 + $0x60] sm:$0xf]
        %v691 = vld [vmem:[#allocation7 + $0x64] sm:$0xf]
        %v692 = vld [vmem:[#allocation7 + $0x68] sm:$0xf]
        %v693 = vld [vmem:[#allocation7 + $0x6c] sm:$0xf]
        %v694 = vld [vmem:[#allocation7 + $0x70] sm:$0xf]
        %v695 = vld [vmem:[#allocation7 + $0x74] sm:$0xf]
        %v696 = vld [vmem:[#allocation7 + $0x78] sm:$0xf]
        %v697 = vld [vmem:[#allocation7 + $0x7c] sm:$0xf]
        %v698 = vld [vmem:[%s4] sm:$0x1]
        %v700 = vlaneseq
        %v701 = vshrl.u32 %v700, 7
        %v702 = vsub.s32 0, %v701
        %v703 = vrot.slane %v698, %v702
        %v737 = vunpack.c.l.b16 %v666
        %v738 = vunpack.c.l.b16 %v667
        %v739 = vunpack.c.l.b16 %v668
        %v740 = vunpack.c.l.b16 %v669
        %v741 = vunpack.c.l.b16 %v670
        %v742 = vunpack.c.l.b16 %v671
        %v743 = vunpack.c.l.b16 %v672
        %v744 = vunpack.c.l.b16 %v673
        %v745 = vunpack.c.l.b16 %v674
        %v746 = vunpack.c.l.b16 %v675
        %v747 = vunpack.c.l.b16 %v676
        %v748 = vunpack.c.l.b16 %v677
        %v749 = vunpack.c.l.b16 %v678
        %v750 = vunpack.c.l.b16 %v679
        %v751 = vunpack.c.l.b16 %v680
        %v752 = vunpack.c.l.b16 %v681
        %v753 = vunpack.c.l.b16 %v682
        %v754 = vunpack.c.l.b16 %v683
        %v755 = vunpack.c.l.b16 %v684
        %v756 = vunpack.c.l.b16 %v685
        %v757 = vunpack.c.l.b16 %v686
        %v758 = vunpack.c.l.b16 %v687
        %v759 = vunpack.c.l.b16 %v688
        %v760 = vunpack.c.l.b16 %v689
        %v761 = vunpack.c.l.b16 %v690
        %v762 = vunpack.c.l.b16 %v691
        %v763 = vunpack.c.l.b16 %v692
        %v764 = vunpack.c.l.b16 %v693
        %v765 = vunpack.c.l.b16 %v694
        %v766 = vunpack.c.l.b16 %v695
        %v767 = vunpack.c.l.b16 %v696
        %v768 = vunpack.c.l.b16 %v697
        %v769 = vpack.c.b16 %v738, %v737
        %v770 = vpack.c.b16 %v740, %v739
        %v771 = vpack.c.b16 %v742, %v741
        %v772 = vpack.c.b16 %v744, %v743
        %v773 = vpack.c.b16 %v746, %v745
        %v774 = vpack.c.b16 %v748, %v747
        %v775 = vpack.c.b16 %v750, %v749
        %v776 = vpack.c.b16 %v752, %v751
        %v777 = vpack.c.b16 %v754, %v753
        %v778 = vpack.c.b16 %v756, %v755
        %v779 = vpack.c.b16 %v758, %v757
        %v780 = vpack.c.b16 %v760, %v759
        %v781 = vpack.c.b16 %v762, %v761
        %v782 = vpack.c.b16 %v764, %v763
        %v783 = vpack.c.b16 %v766, %v765
        %v784 = vpack.c.b16 %v768, %v767
        %801 = vmatprep.subr.bf16.mxu0 0
        %802 = vmatpush1.bf16.msra.mxu0 %v769
        %803 = vmatprep.subr.bf16.mxu0 0
        %804 = vmatpush1.bf16.msra.mxu0 %v770
        %805 = vmatprep.subr.bf16.mxu0 0
        %806 = vmatpush1.bf16.msra.mxu0 %v771
        %807 = vmatprep.subr.bf16.mxu0 0
        %808 = vmatpush1.bf16.msra.mxu0 %v772
        %809 = vmatprep.subr.bf16.mxu0 0
        %810 = vmatpush1.bf16.msra.mxu0 %v773
        %811 = vmatprep.subr.bf16.mxu0 0
        %812 = vmatpush1.bf16.msra.mxu0 %v774
        %813 = vmatprep.subr.bf16.mxu0 0
        %814 = vmatpush1.bf16.msra.mxu0 %v775
        %815 = vmatprep.subr.bf16.mxu0 0
        %816 = vmatpush1.bf16.msra.mxu0 %v776
        %817 = vmatprep.subr.bf16.mxu0 0
        %818 = vmatpush1.bf16.msra.mxu0 %v777
        %819 = vmatprep.subr.bf16.mxu0 0
        %820 = vmatpush1.bf16.msra.mxu0 %v778
        %821 = vmatprep.subr.bf16.mxu0 0
        %822 = vmatpush1.bf16.msra.mxu0 %v779
        %823 = vmatprep.subr.bf16.mxu0 0
        %824 = vmatpush1.bf16.msra.mxu0 %v780
        %825 = vmatprep.subr.bf16.mxu0 0
        %826 = vmatpush1.bf16.msra.mxu0 %v781
        %827 = vmatprep.subr.bf16.mxu0 0
        %828 = vmatpush1.bf16.msra.mxu0 %v782
        %829 = vmatprep.subr.bf16.mxu0 0
        %830 = vmatpush1.bf16.msra.mxu0 %v783
        %831 = vmatprep.subr.bf16.mxu0 0
        %832 = vmatpush1.bf16.msra.mxu0 %v784
        %833 = vmatprep.mubr.bf16.mxu0 %v662
        %834 = vmatmul.mubr.bf16.gmra.mrb[0].mxu0 %v658
        %v835 = vpop.f32.mrb[0].mxu0
        %v836 = vadd.f32 %v703, %v835
        %v837 = vpop.f32.mrb[0].mxu0
        %v838 = vpop.f32.mrb[0].mxu0
        %v839 = vadd.f32 %v703, %v838
        %v840 = vpop.f32.mrb[0].mxu0
        %841 = vmatprep.mubr.bf16.mxu0 %v663
        %842 = vmatmul.mubr.bf16.gmra.mrb[0].mxu0 %v659
        %v843 = vpop.f32.mrb[0].mxu0
        %v844 = vadd.f32 %v703, %v843
        %v845 = vpop.f32.mrb[0].mxu0
        %v846 = vpop.f32.mrb[0].mxu0
        %v847 = vadd.f32 %v703, %v846
        %v848 = vpop.f32.mrb[0].mxu0
        %849 = vmatprep.mubr.bf16.mxu0 %v664
        %850 = vmatmul.mubr.bf16.gmra.mrb[0].mxu0 %v660
        %v851 = vpop.f32.mrb[0].mxu0
        %v852 = vadd.f32 %v703, %v851
        %v853 = vpop.f32.mrb[0].mxu0
        %v854 = vpop.f32.mrb[0].mxu0
        %v855 = vadd.f32 %v703, %v854
        %v856 = vpop.f32.mrb[0].mxu0
        %857 = vmatprep.mubr.bf16.mxu0 %v665
        %858 = vmatmul.mubr.bf16.gmra.mrb[0].mxu0 %v661
        %v859 = vpop.f32.mrb[0].mxu0
        %v860 = vadd.f32 %v703, %v859
        %v861 = vpop.f32.mrb[0].mxu0
        %v862 = vpop.f32.mrb[0].mxu0
        %v863 = vadd.f32 %v703, %v862
        %v864 = vpop.f32.mrb[0].mxu0
        %865 = vdwg.mxu0
        %v866 = vmax.f32 %v836, 0.0
        %v867 = vmax.f32 %v839, 0.0
        %v868 = vmax.f32 %v844, 0.0
        %v869 = vmax.f32 %v847, 0.0
        %v870 = vmax.f32 %v852, 0.0
        %v871 = vmax.f32 %v855, 0.0
        %v872 = vmax.f32 %v860, 0.0
        %v873 = vmax.f32 %v863, 0.0
        %v874 = vrot.slane %v866, 1
        %v875 = vrot.slane %v867, 1
        %v876 = vrot.slane %v868, 1
        %v877 = vrot.slane %v869, 1
        %v878 = vrot.slane %v870, 1
        %v879 = vrot.slane %v871, 1
        %v880 = vrot.slane %v872, 1
        %v881 = vrot.slane %v873, 1
        %v882 = vsel %vm417, %v880, %v881
        %v883 = vsel %vm417, %v879, %v880
        %v884 = vsel %vm417, %v878, %v879
        %v885 = vsel %vm417, %v877, %v878
        %v886 = vsel %vm417, %v876, %v877
        %v887 = vsel %vm417, %v875, %v876
        %v888 = vsel %vm417, %v874, %v875
        %v889 = vsel %vm417, %v881, %v874
        %v890 = vpack.c.bf16 %v867, %v866
        %v891 = vpack.c.bf16 %v869, %v868
        %v892 = vpack.c.bf16 %v871, %v870
        %v893 = vpack.c.bf16 %v873, %v872
        %v894 = vpack.c.bf16 %v887, %v888
        %v895 = vpack.c.bf16 %v885, %v886
        %v896 = vpack.c.bf16 %v883, %v884
        %v897 = vpack.c.bf16 %v889, %v882
        %v898 = vld [vmem:[#allocation8] sm:$0xf]
        %v899 = vld [vmem:[#allocation8 + $0x4] sm:$0xf]
        %v900 = vld [vmem:[#allocation8 + $0x8] sm:$0xf]
        %v901 = vld [vmem:[#allocation8 + $0xc] sm:$0xf]
        %v902 = vld [vmem:[#allocation8 + $0x10] sm:$0xf]
        %v903 = vld [vmem:[#allocation8 + $0x14] sm:$0xf]
        %v904 = vld [vmem:[#allocation8 + $0x18] sm:$0xf]
        %v905 = vld [vmem:[#allocation8 + $0x1c] sm:$0xf]
        %v906 = vld [vmem:[#allocation8 + $0x20] sm:$0xf]
        %v907 = vld [vmem:[#allocation8 + $0x24] sm:$0xf]
        %v908 = vld [vmem:[#allocation8 + $0x28] sm:$0xf]
        %v909 = vld [vmem:[#allocation8 + $0x2c] sm:$0xf]
        %v910 = vld [vmem:[#allocation8 + $0x30] sm:$0xf]
        %v911 = vld [vmem:[#allocation8 + $0x34] sm:$0xf]
        %v912 = vld [vmem:[#allocation8 + $0x38] sm:$0xf]
        %v913 = vld [vmem:[#allocation8 + $0x3c] sm:$0xf]
        %v914 = vld [vmem:[#allocation8 + $0x40] sm:$0xf]
        %v915 = vld [vmem:[#allocation8 + $0x44] sm:$0xf]
        %v916 = vld [vmem:[#allocation8 + $0x48] sm:$0xf]
        %v917 = vld [vmem:[#allocation8 + $0x4c] sm:$0xf]
        %v918 = vld [vmem:[#allocation8 + $0x50] sm:$0xf]
        %v919 = vld [vmem:[#allocation8 + $0x54] sm:$0xf]
        %v920 = vld [vmem:[#allocation8 + $0x58] sm:$0xf]
        %v921 = vld [vmem:[#allocation8 + $0x5c] sm:$0xf]
        %v922 = vld [vmem:[#allocation8 + $0x60] sm:$0xf]
        %v923 = vld [vmem:[#allocation8 + $0x64] sm:$0xf]
        %v924 = vld [vmem:[#allocation8 + $0x68] sm:$0xf]
        %v925 = vld [vmem:[#allocation8 + $0x6c] sm:$0xf]
        %v926 = vld [vmem:[#allocation8 + $0x70] sm:$0xf]
        %v927 = vld [vmem:[#allocation8 + $0x74] sm:$0xf]
        %v928 = vld [vmem:[#allocation8 + $0x78] sm:$0xf]
        %v929 = vld [vmem:[#allocation8 + $0x7c] sm:$0xf]
        %v930 = vld [vmem:[%s6] sm:$0x1]
        %v932 = vlaneseq
        %v933 = vshrl.u32 %v932, 7
        %v934 = vsub.s32 0, %v933
        %v935 = vrot.slane %v930, %v934
        %v969 = vunpack.c.l.b16 %v898
        %v970 = vunpack.c.l.b16 %v899
        %v971 = vunpack.c.l.b16 %v900
        %v972 = vunpack.c.l.b16 %v901
        %v973 = vunpack.c.l.b16 %v902
        %v974 = vunpack.c.l.b16 %v903
        %v975 = vunpack.c.l.b16 %v904
        %v976 = vunpack.c.l.b16 %v905
        %v977 = vunpack.c.l.b16 %v906
        %v978 = vunpack.c.l.b16 %v907
        %v979 = vunpack.c.l.b16 %v908
        %v980 = vunpack.c.l.b16 %v909
        %v981 = vunpack.c.l.b16 %v910
        %v982 = vunpack.c.l.b16 %v911
        %v983 = vunpack.c.l.b16 %v912
        %v984 = vunpack.c.l.b16 %v913
        %v985 = vunpack.c.l.b16 %v914
        %v986 = vunpack.c.l.b16 %v915
        %v987 = vunpack.c.l.b16 %v916
        %v988 = vunpack.c.l.b16 %v917
        %v989 = vunpack.c.l.b16 %v918
        %v990 = vunpack.c.l.b16 %v919
        %v991 = vunpack.c.l.b16 %v920
        %v992 = vunpack.c.l.b16 %v921
        %v993 = vunpack.c.l.b16 %v922
        %v994 = vunpack.c.l.b16 %v923
        %v995 = vunpack.c.l.b16 %v924
        %v996 = vunpack.c.l.b16 %v925
        %v997 = vunpack.c.l.b16 %v926
        %v998 = vunpack.c.l.b16 %v927
        %v999 = vunpack.c.l.b16 %v928
        %v1000 = vunpack.c.l.b16 %v929
        %v1001 = vpack.c.b16 %v970, %v969
        %v1002 = vpack.c.b16 %v972, %v971
        %v1003 = vpack.c.b16 %v974, %v973
        %v1004 = vpack.c.b16 %v976, %v975
        %v1005 = vpack.c.b16 %v978, %v977
        %v1006 = vpack.c.b16 %v980, %v979
        %v1007 = vpack.c.b16 %v982, %v981
        %v1008 = vpack.c.b16 %v984, %v983
        %v1009 = vpack.c.b16 %v986, %v985
        %v1010 = vpack.c.b16 %v988, %v987
        %v1011 = vpack.c.b16 %v990, %v989
        %v1012 = vpack.c.b16 %v992, %v991
        %v1013 = vpack.c.b16 %v994, %v993
        %v1014 = vpack.c.b16 %v996, %v995
        %v1015 = vpack.c.b16 %v998, %v997
        %v1016 = vpack.c.b16 %v1000, %v999
        %1033 = vmatprep.subr.bf16.mxu0 0
        %1034 = vmatpush1.bf16.msra.mxu0 %v1001
        %1035 = vmatprep.subr.bf16.mxu0 0
        %1036 = vmatpush1.bf16.msra.mxu0 %v1002
        %1037 = vmatprep.subr.bf16.mxu0 0
        %1038 = vmatpush1.bf16.msra.mxu0 %v1003
        %1039 = vmatprep.subr.bf16.mxu0 0
        %1040 = vmatpush1.bf16.msra.mxu0 %v1004
        %1041 = vmatprep.subr.bf16.mxu0 0
        %1042 = vmatpush1.bf16.msra.mxu0 %v1005
        %1043 = vmatprep.subr.bf16.mxu0 0
        %1044 = vmatpush1.bf16.msra.mxu0 %v1006
        %1045 = vmatprep.subr.bf16.mxu0 0
        %1046 = vmatpush1.bf16.msra.mxu0 %v1007
        %1047 = vmatprep.subr.bf16.mxu0 0
        %1048 = vmatpush1.bf16.msra.mxu0 %v1008
        %1049 = vmatprep.subr.bf16.mxu0 0
        %1050 = vmatpush1.bf16.msra.mxu0 %v1009
        %1051 = vmatprep.subr.bf16.mxu0 0
        %1052 = vmatpush1.bf16.msra.mxu0 %v1010
        %1053 = vmatprep.subr.bf16.mxu0 0
        %1054 = vmatpush1.bf16.msra.mxu0 %v1011
        %1055 = vmatprep.subr.bf16.mxu0 0
        %1056 = vmatpush1.bf16.msra.mxu0 %v1012
        %1057 = vmatprep.subr.bf16.mxu0 0
        %1058 = vmatpush1.bf16.msra.mxu0 %v1013
        %1059 = vmatprep.subr.bf16.mxu0 0
        %1060 = vmatpush1.bf16.msra.mxu0 %v1014
        %1061 = vmatprep.subr.bf16.mxu0 0
        %1062 = vmatpush1.bf16.msra.mxu0 %v1015
        %1063 = vmatprep.subr.bf16.mxu0 0
        %1064 = vmatpush1.bf16.msra.mxu0 %v1016
        %1065 = vmatprep.mubr.bf16.mxu0 %v894
        %1066 = vmatmul.mubr.bf16.gmra.mrb[0].mxu0 %v890
        %v1067 = vpop.f32.mrb[0].mxu0
        %v1068 = vadd.f32 %v935, %v1067
        %v1069 = vpop.f32.mrb[0].mxu0
        %v1070 = vpop.f32.mrb[0].mxu0
        %v1071 = vadd.f32 %v935, %v1070
        %v1072 = vpop.f32.mrb[0].mxu0
        %1073 = vmatprep.mubr.bf16.mxu0 %v895
        %1074 = vmatmul.mubr.bf16.gmra.mrb[0].mxu0 %v891
        %v1075 = vpop.f32.mrb[0].mxu0
        %v1076 = vadd.f32 %v935, %v1075
        %v1077 = vpop.f32.mrb[0].mxu0
        %v1078 = vpop.f32.mrb[0].mxu0
        %v1079 = vadd.f32 %v935, %v1078
        %v1080 = vpop.f32.mrb[0].mxu0
        %1081 = vmatprep.mubr.bf16.mxu0 %v896
        %1082 = vmatmul.mubr.bf16.gmra.mrb[0].mxu0 %v892
        %v1083 = vpop.f32.mrb[0].mxu0
        %v1084 = vadd.f32 %v935, %v1083
        %v1085 = vpop.f32.mrb[0].mxu0
        %v1086 = vpop.f32.mrb[0].mxu0
        %v1087 = vadd.f32 %v935, %v1086
        %v1088 = vpop.f32.mrb[0].mxu0
        %1089 = vmatprep.mubr.bf16.mxu0 %v897
        %1090 = vmatmul.mubr.bf16.gmra.mrb[0].mxu0 %v893
        %v1091 = vpop.f32.mrb[0].mxu0
        %v1092 = vadd.f32 %v935, %v1091
        %v1093 = vpop.f32.mrb[0].mxu0
        %v1094 = vpop.f32.mrb[0].mxu0
        %v1095 = vadd.f32 %v935, %v1094
        %v1096 = vpop.f32.mrb[0].mxu0
        %1097 = vdwg.mxu0
        %v1098 = vmax.f32 %v1068, 0.0
        %v1099 = vmax.f32 %v1071, 0.0
        %v1100 = vmax.f32 %v1076, 0.0
        %v1101 = vmax.f32 %v1079, 0.0
        %v1102 = vmax.f32 %v1084, 0.0
        %v1103 = vmax.f32 %v1087, 0.0
        %v1104 = vmax.f32 %v1092, 0.0
        %v1105 = vmax.f32 %v1095, 0.0
        %vm1106 = vcmp.lt.s32.totalorder %v416, 5
        %v1107 = vsel %vm1106, %v1098, 0.0
        %v1108 = vsel %vm1106, %v1099, 0.0
        %v1109 = vsel %vm1106, %v1100, 0.0
        %v1110 = vsel %vm1106, %v1101, 0.0
        %v1111 = vsel %vm1106, %v1102, 0.0
        %v1112 = vsel %vm1106, %v1103, 0.0
        %v1113 = vsel %vm1106, %v1104, 0.0
        %v1114 = vsel %vm1106, %v1105, 0.0
        %v1115 = vrot.slane %v1107, 4
        %v1116 = vmax.f32 %v1107, %v1115
        %v1117 = vrot.slane %v1116, 2
        %v1118 = vmax.f32 %v1116, %v1117
        %v1119 = vrot.slane %v1118, 1
        %v1120 = vmax.f32 %v1118, %v1119
        %v1121 = vrot.slane %v1108, 4
        %v1122 = vmax.f32 %v1108, %v1121
        %v1123 = vrot.slane %v1122, 2
        %v1124 = vmax.f32 %v1122, %v1123
        %v1125 = vrot.slane %v1124, 1
        %v1126 = vmax.f32 %v1124, %v1125
        %v1127 = vrot.slane %v1109, 4
        %v1128 = vmax.f32 %v1109, %v1127
        %v1129 = vrot.slane %v1128, 2
        %v1130 = vmax.f32 %v1128, %v1129
        %v1131 = vrot.slane %v1130, 1
        %v1132 = vmax.f32 %v1130, %v1131
        %v1133 = vrot.slane %v1110, 4
        %v1134 = vmax.f32 %v1110, %v1133
        %v1135 = vrot.slane %v1134, 2
        %v1136 = vmax.f32 %v1134, %v1135
        %v1137 = vrot.slane %v1136, 1
        %v1138 = vmax.f32 %v1136, %v1137
        %v1139 = vrot.slane %v1111, 4
        %v1140 = vmax.f32 %v1111, %v1139
        %v1141 = vrot.slane %v1140, 2
        %v1142 = vmax.f32 %v1140, %v1141
        %v1143 = vrot.slane %v1142, 1
        %v1144 = vmax.f32 %v1142, %v1143
        %v1145 = vrot.slane %v1112, 4
        %v1146 = vmax.f32 %v1112, %v1145
        %v1147 = vrot.slane %v1146, 2
        %v1148 = vmax.f32 %v1146, %v1147
        %v1149 = vrot.slane %v1148, 1
        %v1150 = vmax.f32 %v1148, %v1149
        %v1151 = vrot.slane %v1113, 4
        %v1152 = vmax.f32 %v1113, %v1151
        %v1153 = vrot.slane %v1152, 2
        %v1154 = vmax.f32 %v1152, %v1153
        %v1155 = vrot.slane %v1154, 1
        %v1156 = vmax.f32 %v1154, %v1155
        %v1157 = vrot.slane %v1114, 4
        %v1158 = vmax.f32 %v1114, %v1157
        %v1159 = vrot.slane %v1158, 2
        %v1160 = vmax.f32 %v1158, %v1159
        %v1161 = vrot.slane %v1160, 1
        %v1162 = vmax.f32 %v1160, %v1161
        %v1163 = vld [vmem:[%s7] sm:$0x1]
        %v1165 = vlaneseq
        %v1166 = vshrl.u32 %v1165, 7
        %v1167 = vsub.s32 0, %v1166
        %v1168 = vrot.slane %v1163, %v1167
        %v1170 = vmul.f32 %v1120, %v1168
        %v1171 = vmul.f32 %v1126, %v1168
        %v1172 = vmul.f32 %v1132, %v1168
        %v1173 = vmul.f32 %v1138, %v1168
        %v1174 = vmul.f32 %v1144, %v1168
        %v1175 = vmul.f32 %v1150, %v1168
        %v1176 = vmul.f32 %v1156, %v1168
        %v1177 = vmul.f32 %v1162, %v1168
        %v1186 = vrot.slane %v1171, 7
        %vm1187 = vcmask 1041409
        %v1188 = vsel %vm1187, %v1186, %v1170
        %v1189 = vrot.slane %v1172, 6
        %vm1190 = vcmask 1042434
        %v1191 = vsel %vm1190, %v1189, %v1188
        %v1192 = vrot.slane %v1173, 5
        %vm1193 = vcmask 1043459
        %v1194 = vsel %vm1193, %v1192, %v1191
        %v1195 = vrot.slane %v1174, 4
        %vm1196 = vcmask 1044484
        %v1197 = vsel %vm1196, %v1195, %v1194
        %v1198 = vrot.slane %v1175, 3
        %vm1199 = vcmask 1045509
        %v1200 = vsel %vm1199, %v1198, %v1197
        %v1201 = vrot.slane %v1176, 2
        %vm1202 = vcmask 1046534
        %v1203 = vsel %vm1202, %v1201, %v1200
        %v1204 = vrot.slane %v1177, 1
        %vm1205 = vcmask 1047559
        %v1206 = vsel %vm1205, %v1204, %v1203
        %1208 = vadd.xlane.f32.xlu0 %v1206
        %v1209 = vpop.xlane.xlu0 %1208
        %v1210 = vld [vmem:[#allocation2] sm:$0x1]
        %v1212 = vlaneseq
        %v1213 = vshrl.u32 %v1212, 7
        %v1214 = vsub.s32 0, %v1213
        %v1215 = vrot.slane %v1210, %v1214
        %v1217 = vadd.f32 %v1209, %v1215
        %v1218 = vxor.u32 %v1217, 2147483648
        %v1219 = vmul.f32 %v1218, 1.442695
        %v1220 = vpow.pop %v1219
        %v1221 = vadd.f32 %v1220, 1.0
        %v1222 = vrcp.pop %v1221
        %v1223 = vmul.f32 1.0, %v1222
        %vm1224 = vcmask 7168
        %1225 = vst.msk [vmem:[%s397] sm:$0xff] %vm1224, %v1223
        %p1226 = scmp.lt.s32.totalorder %s27, 1
        %s1227 = scalar_select %p1226, %s27, 1
        %s1228 = smul.addr %s1227, 8
        %s1229 = scalar_lea.vmem %s9, %s1228
        // Predicated region
        $region73: #{tpu_custom_call.1} parent=55 // pred_check
          %p1230 = pneg %p239
        $region74: #{tpu_custom_call.1} parent=55 // pred_check_branch
          %1232 = sbr.rel (%p1230) target = $region76
        $region75: #{tpu_custom_call.1} parent=55 // pred_region
          _
        $region76: #{tpu_custom_call.1} parent=55 // pred_fallthru
          _
      $region56: #{tpu_custom_call.1} parent=5 // pred_fallthru
        _
      %p1233 = scmp.le.s32.totalorder 2, %s22
      // Predicated region
      $region77: #{tpu_custom_call.1} parent=5 // pred_check
        %p1234 = pneg %p1233
      $region78: #{tpu_custom_call.1} parent=5 // pred_check_branch
        %1236 = sbr.rel (%p1234) target = $region80
      $region79: #{tpu_custom_call.1} parent=5 // pred_region
        %s1237 = ssub.s32 %s22, 2
        // Predicated region
        $region81: #{tpu_custom_call.1} parent=79 // pred_check
          %p1238 = pneg %p245
        $region82: #{tpu_custom_call.1} parent=79 // pred_check_branch
          %1240 = sbr.rel (%p1238) target = $region84
        $region83: #{tpu_custom_call.1} parent=79 // pred_region
          %p1241 = scmp.lt.s32.totalorder %s28, 1
          %s1242 = scalar_select %p1241, %s28, 1
          %s1243 = smul.addr %s1242, 8
          %s1244 = scalar_lea.vmem %s9, %s1243
        $region84: #{tpu_custom_call.1} parent=79 // pred_fallthru
          _
      $region80: #{tpu_custom_call.1} parent=5 // pred_fallthru
        _
    $region6: #{tpu_custom_call.1} parent=1 // loop_footer
      %s26 = sadd.s32 1, %s22
    $region7: #{tpu_custom_call.1} parent=1 // loop_footer_branch
      %21 = sbr.rel target = $region3
    $region8: #{tpu_custom_call.1} parent=1 // loop_exit
      _
    %1245 = vsyncpa [#allocation4], 1
    %s1246 = scalar_lea.sflag [#allocation4], 1
    %1247 = vsyncpa %s1246, 1
    %1248 = vsyncpa [#allocation6], 1
    %1249 = vsyncpa [#allocation9], 1

</llo_original>
